<compile_context>
chip_gen: v6e
topology: v6e:2x2x1
jax: 0.10.0
libtpu: 0.0.40
codegen_flags: <defaults>
</compile_context>

<pallas_src>
import math
from functools import partial

import jax
import jax.numpy as jnp
from jax.experimental import pallas as pl
from jax.experimental.pallas import tpu as pltpu


def _round_up(x: int, m: int) -> int:
    return (x + m - 1) // m * m


def _vmem_capacity_bytes() -> int:
    try:
        return int(pltpu.get_tpu_info().vmem_capacity_bytes)
    except Exception:
        return 64 * 1024 * 1024  # conservative (v7x per-core VMEM)


# --------------------------------------------------------------------------
# Kernels
# --------------------------------------------------------------------------
def _qkv_kernel(x_ref, w_ref, b_ref, o_ref):
    # x_ref: (TM, K) bf16, w_ref: (K, TN) bf16, b_ref: (1, TN) f32, o_ref: (TM, TN).
    acc = jnp.dot(x_ref[...], w_ref[...], preferred_element_type=jnp.float32)
    o_ref[...] = (acc + b_ref[...]).astype(o_ref.dtype)


def _qkv_kernel_kblocked(x_ref, w_ref, b_ref, o_ref, acc_ref):
    # Blocked-K reduction: grid = (m, n, k), k innermost ("arbitrary").
    k = pl.program_id(2)

    @pl.when(k == 0)
    def _():
        acc_ref[...] = jnp.zeros_like(acc_ref)

    acc_ref[...] += jnp.dot(x_ref[...], w_ref[...], preferred_element_type=jnp.float32)

    @pl.when(k == pl.num_programs(2) - 1)
    def _():
        o_ref[...] = (acc_ref[...] + b_ref[...]).astype(o_ref.dtype)


# --------------------------------------------------------------------------
# Tile selection (static, shape-driven)
# --------------------------------------------------------------------------
def _choose_tiles(M, K, Np, budget, out_size, tm_target, tn_target):
    """Return (tm, tn, tk). tk=None means K kept whole (no reduction axis)."""

    def kwhole_cost(tm_, tn_):
        # Double-buffered x / W / b / out blocks.
        return 2 * (tm_ * K * 2 + K * tn_ * 2 + tn_ * 4 + tm_ * tn_ * out_size)

    def kblock_cost(tm_, tn_, tk_):
        return (2 * (tm_ * tk_ * 2 + tk_ * tn_ * 2 + tn_ * 4 + tm_ * tn_ * out_size)
                + tm_ * tn_ * 4)  # + f32 accumulator scratch

    tm_full = _round_up(M, 8)
    tm_cands = []
    for t in (tm_target, 256, 128, 64, 32, 16, 8):
        t = min(t, tm_full)
        if t not in tm_cands:
            tm_cands.append(t)

    tn_divs = [c for c in (2048, 1024, 512, 256, 128) if c <= Np and Np % c == 0]
    Kp128 = _round_up(K, 128)
    tk_divs = [c for c in (1024, 512, 256, 128) if c <= Kp128]

    # 1) Whole fused weight VMEM-resident: x and W each read from HBM once.
    for tm in tm_cands:
        if (tm >= 128 or tm == tm_full) and kwhole_cost(tm, Np) <= budget:
            return tm, Np, None
    # 2) K whole, tile N large (weight tile resident across the M sweep).
    for tm in tm_cands:
        for tn in tn_divs:
            if tn <= tn_target and kwhole_cost(tm, tn) <= budget:
                return tm, tn, None
    # 3) Blocked-K reduction (very large H): keep tiles large, bound VMEM.
    for tm in tm_cands:
        for tn in tn_divs:
            if tn > tn_target:
                continue
            for tk in tk_divs:
                if kblock_cost(tm, tn, tk) <= budget:
                    return tm, tn, tk
    # Last resort.
    return tm_cands[-1], 128, 128


# --------------------------------------------------------------------------
# Fused QKV matmul
# --------------------------------------------------------------------------
def fused_qkv_matmul(x2d, w_qkv, b_qkv, n_valid=None, *,
                     tm_target=512, tn_target=1024,
                     out_dtype=jnp.float32, tiles=None):
    """qkv2d = x2d @ W_fused + b_fused, tiled & pipelined on TPU.

    x2d:   (M, K)     cast to bf16 for the MXU
    w_qkv: (K, Np)    fused weight (Np is 3H padded to a lane multiple)
    b_qkv: (1, Np)    fused bias (f32)
    n_valid: number of valid output columns (3H); result is sliced to it.
    tiles: optional (tm, tn, tk_or_None) override (testing / manual tuning).
    """
    M, K = x2d.shape
    Kw, Np = w_qkv.shape
    assert Kw == K, "weight K mismatch"
    if n_valid is None:
        n_valid = Np
    out_size = jnp.dtype(out_dtype).itemsize

    x2d = x2d.astype(jnp.bfloat16)
    w_qkv = w_qkv.astype(jnp.bfloat16)
    b_qkv = b_qkv.astype(jnp.float32)

    # Defensive lane alignment (prepare_qkv_params normally does this once).
    if Np % 128 != 0:
        pad = _round_up(Np, 128) - Np
        w_qkv = jnp.pad(w_qkv, ((0, 0), (0, pad)))
        b_qkv = jnp.pad(b_qkv, ((0, 0), (0, pad)))
        Np += pad

    cap = _vmem_capacity_bytes()
    budget = min(int(cap * 0.6), 96 * 1024 * 1024)

    if tiles is not None:
        tm, tn, tk = tiles
    else:
        tm, tn, tk = _choose_tiles(M, K, Np, budget, out_size, tm_target, tn_target)

    Mp = _round_up(M, tm)
    if Mp != M:
        x2d = jnp.pad(x2d, ((0, Mp - M), (0, 0)))

    if tk is not None:
        Kp = _round_up(K, tk)
        if Kp != K:
            x2d = jnp.pad(x2d, ((0, 0), (0, Kp - K)))
            w_qkv = jnp.pad(w_qkv, ((0, Kp - K), (0, 0)))
        K = Kp

    flops = 2 * Mp * K * Np

    if tk is None and tn == Np:
        # --- whole fused weight resident in VMEM --------------------------
        grid = (Mp // tm,)
        in_specs = [
            pl.BlockSpec((tm, K), lambda m: (m, 0)),      # activations, streamed
            pl.BlockSpec((K, Np), lambda m: (0, 0)),      # full weight, resident
            pl.BlockSpec((1, Np), lambda m: (0, 0)),      # full bias, resident
        ]
        out_specs = pl.BlockSpec((tm, Np), lambda m: (m, 0))
        scratch = ()
        kernel = _qkv_kernel
        semantics = ("parallel",)   # megacore shards the M sweep (v7x)
        bytes_accessed = Mp * K * 2 + K * Np * 2 + Np * 4 + Mp * Np * out_size
        vmem_need = 2 * (tm * K * 2 + K * Np * 2 + Np * 4 + tm * Np * out_size)
    elif tk is None:
        # --- n outer / m inner: weight tile resident across the M sweep ---
        grid = (Np // tn, Mp // tm)
        in_specs = [
            pl.BlockSpec((tm, K), lambda n, m: (m, 0)),
            pl.BlockSpec((K, tn), lambda n, m: (0, n)),
            pl.BlockSpec((1, tn), lambda n, m: (0, n)),
        ]
        out_specs = pl.BlockSpec((tm, tn), lambda n, m: (m, n))
        scratch = ()
        kernel = _qkv_kernel
        semantics = ("parallel", "parallel")
        bytes_accessed = ((Np // tn) * Mp * K * 2 + K * Np * 2
                          + Np * 4 + Mp * Np * out_size)
        vmem_need = 2 * (tm * K * 2 + K * tn * 2 + tn * 4 + tm * tn * out_size)
    else:
        # --- blocked-K reduction with f32 accumulator (very large H) ------
        grid = (Mp // tm, Np // tn, K // tk)
        in_specs = [
            pl.BlockSpec((tm, tk), lambda m, n, k: (m, k)),
            pl.BlockSpec((tk, tn), lambda m, n, k: (k, n)),
            pl.BlockSpec((1, tn), lambda m, n, k: (0, n)),
        ]
        out_specs = pl.BlockSpec((tm, tn), lambda m, n, k: (m, n))
        scratch = (pltpu.VMEM((tm, tn), jnp.float32),)
        kernel = _qkv_kernel_kblocked
        semantics = ("parallel", "parallel", "arbitrary")
        bytes_accessed = ((Np // tn) * Mp * K * 2 + (Mp // tm) * K * Np * 2
                          + Np * 4 + Mp * Np * out_size)
        vmem_need = (2 * (tm * tk * 2 + tk * tn * 2 + tn * 4 + tm * tn * out_size)
                     + tm * tn * 4)

    # Computed VMEM limit: actual tile bytes + headroom, capped below physical.
    vmem_limit = int(min(max(vmem_need + 8 * 1024 * 1024, 32 * 1024 * 1024),
                         int(cap * 0.9)))

    out = pl.pallas_call(
        kernel,
        out_shape=jax.ShapeDtypeStruct((Mp, Np), out_dtype),
        grid_spec=pltpu.PrefetchScalarGridSpec(
            num_scalar_prefetch=0,
            grid=grid,
            in_specs=in_specs,
            out_specs=out_specs,
            scratch_shapes=scratch,
        ),
        compiler_params=pltpu.CompilerParams(
            dimension_semantics=semantics,
            vmem_limit_bytes=vmem_limit,
        ),
        cost_estimate=pl.CostEstimate(
            flops=int(flops), transcendentals=0,
            bytes_accessed=int(bytes_accessed)),
    )(x2d, w_qkv, b_qkv)

    if Mp != M or Np != n_valid:
        out = out[:M, :n_valid]
    return out


# --------------------------------------------------------------------------
# Parameter prep (done ONCE, hoisted out of the per-call path)
# --------------------------------------------------------------------------
def prepare_qkv_params(params, pad_to=128):
    """Fuse q/k/v weights, pre-transpose to (H, 3H), pre-cast to bf16, and
    pre-pad N to a lane multiple so no per-call weight pad/copy is needed."""
    w_qkv = jnp.concatenate(
        [params["wq"].T, params["wk"].T, params["wv"].T], axis=1
    ).astype(jnp.bfloat16)                                       # (H, 3H)
    b_qkv = jnp.concatenate(
        [params["bq"], params["bk"], params["bv"]], axis=0
    ).astype(jnp.float32).reshape(1, -1)                         # (1, 3H)
    N = w_qkv.shape[1]
    Np = _round_up(N, pad_to)
    if Np != N:
        w_qkv = jnp.pad(w_qkv, ((0, 0), (0, Np - N)))
        b_qkv = jnp.pad(b_qkv, ((0, 0), (0, Np - N)))
    return w_qkv, b_qkv


# --------------------------------------------------------------------------
# Forward (LIVFeaturizer, featurizer_type='dense', eval mode)
# --------------------------------------------------------------------------
@partial(jax.jit, static_argnums=(3,))
def liv_featurizer_forward(x, w_qkv, b_qkv, num_heads):
    """Returns (q, k, v), each (B, num_heads, S, head_dim), float32."""
    B, S, H = x.shape
    head_dim = H // num_heads

    x2d = x.reshape(B * S, H)
    qkv2d = fused_qkv_matmul(x2d, w_qkv, b_qkv, n_valid=3 * H)    # (B*S, 3H) f32
    qkv = qkv2d.reshape(B, S, 3 * H)

    q, k, v = jnp.split(qkv, 3, axis=-1)

    def split_heads(t):
        # 'b s (h d) -> b h s d'  (output layout mandated by the module contract)
        return t.reshape(B, S, num_heads, head_dim).transpose(0, 2, 1, 3)

    # Dropout in eval mode is identity.
    return split_heads(q), split_heads(k), split_heads(v)


def _init_linear(key, out_dim, in_dim):
    # Deterministic init mimicking nn.Linear's U(-1/sqrt(in), 1/sqrt(in)).
    kw, kb = jax.random.split(key)
    bound = 1.0 / math.sqrt(in_dim)
    w = jax.random.uniform(kw, (out_dim, in_dim), jnp.float32, -bound, bound)
    b = jax.random.uniform(kb, (out_dim,), jnp.float32, -bound, bound)
    return w, b


if __name__ == "__main__":
    # ---------------- Test 1: full forward (whole-weight-resident path) ----
    B, S, H, NUM_HEADS = 2, 8, 32, 8

    key = jax.random.PRNGKey(0)
    kx, kq, kk, kv, k2 = jax.random.split(key, 5)

    x = jax.random.normal(kx, (B, S, H), jnp.float32)
    wq, bq = _init_linear(kq, H, H)
    wk, bk = _init_linear(kk, H, H)
    wv, bv = _init_linear(kv, H, H)
    params = {"wq": wq, "bq": bq, "wk": wk, "bk": bk, "wv": wv, "bv": bv}

    w_qkv, b_qkv = prepare_qkv_params(params)     # fused + padded ONCE

    q, k, v = liv_featurizer_forward(x, w_qkv, b_qkv, NUM_HEADS)
    jax.block_until_ready((q, k, v))

    def ref(x, w, b):
        # Reference with identical bf16 operand rounding + f32 accumulation.
        xb = x.reshape(B * S, H).astype(jnp.bfloat16).astype(jnp.float32)
        wb = w.T.astype(jnp.bfloat16).astype(jnp.float32)
        t = xb @ wb + b
        return t.reshape(B, S, NUM_HEADS, H // NUM_HEADS).transpose(0, 2, 1, 3)

    def ref_f32(x, w, b):
        t = x.reshape(B * S, H) @ w.T + b
        return t.reshape(B, S, NUM_HEADS, H // NUM_HEADS).transpose(0, 2, 1, 3)

    assert q.shape == (B, NUM_HEADS, S, H // NUM_HEADS)
    assert k.shape == (B, NUM_HEADS, S, H // NUM_HEADS)
    assert v.shape == (B, NUM_HEADS, S, H // NUM_HEADS)
    assert jnp.allclose(q, ref(x, wq, bq), atol=1e-4)
    assert jnp.allclose(k, ref(x, wk, bk), atol=1e-4)
    assert jnp.allclose(v, ref(x, wv, bv), atol=1e-4)
    assert jnp.allclose(q, ref_f32(x, wq, bq), atol=5e-2)
    assert jnp.allclose(k, ref_f32(x, wk, bk), atol=5e-2)
    assert jnp.allclose(v, ref_f32(x, wv, bv), atol=5e-2)

    # ---------------- Tests 2/3: exercise the tiled-N and blocked-K paths --
    H2, M2 = 256, 64
    ka, kb2, kc = jax.random.split(k2, 3)
    x2 = jax.random.normal(ka, (M2, H2), jnp.float32)
    w2 = jax.random.normal(kb2, (H2, 3 * H2), jnp.float32) * 0.05
    b2 = jax.random.normal(kc, (1, 3 * H2), jnp.float32) * 0.05

    xr = x2.astype(jnp.bfloat16).astype(jnp.float32)
    wr = w2.astype(jnp.bfloat16).astype(jnp.float32)
    ref2 = xr @ wr + b2

    # Tiled-N path (K whole, weight tile resident over the M sweep).
    out_tiled = fused_qkv_matmul(x2, w2, b2, n_valid=3 * H2, tiles=(64, 256, None))
    jax.block_until_ready(out_tiled)
    assert jnp.allclose(out_tiled, ref2, atol=1e-3, rtol=1e-3)

    # Blocked-K path (f32 accumulator, pl.when init/finalize).
    out_kblk = fused_qkv_matmul(x2, w2, b2, n_valid=3 * H2, tiles=(64, 256, 128))
    jax.block_until_ready(out_kblk)
    assert jnp.allclose(out_kblk, ref2, atol=1e-3, rtol=1e-3)

    print("KERNEL_OK")
</pallas_src>

<mosaic_0001>
module attributes {stable_mosaic.version = 11 : i64} {
  func.func @_qkv_kernel(%arg0: i32, %arg1: memref<16x32xbf16, #tpu.memory_space<vmem>>, %arg2: memref<32x128xbf16, #tpu.memory_space<vmem>>, %arg3: memref<1x128xf32, #tpu.memory_space<vmem>>, %arg4: memref<16x128xf32, #tpu.memory_space<vmem>>) attributes {dimension_semantics = [#tpu.dimension_semantics<parallel>], iteration_bounds = array<i64: 1>, scalar_prefetch = 0 : i64, scratch_operands = 0 : i64, tpu.core_type = #tpu.core_type<tc>, window_params = [{transform_indices = @transform_0, window_bounds = array<i64: 16, 32>}, {pipeline_mode = #tpu.pipeline_mode<synchronous>, transform_indices = @transform_1, window_bounds = array<i64: 32, 128>}, {pipeline_mode = #tpu.pipeline_mode<synchronous>, transform_indices = @transform_2, window_bounds = array<i64: 1, 128>}, {transform_indices = @transform_3, window_bounds = array<i64: 16, 128>}]} {
    %c0 = arith.constant 0 : index
    %c0_0 = arith.constant 0 : index
    %0 = vector.load %arg1[%c0, %c0_0] : memref<16x32xbf16, #tpu.memory_space<vmem>>, vector<16x32xbf16>
    %c0_1 = arith.constant 0 : index
    %c0_2 = arith.constant 0 : index
    %1 = vector.load %arg2[%c0_1, %c0_2] : memref<32x128xbf16, #tpu.memory_space<vmem>>, vector<32x128xbf16>
    %cst = arith.constant dense<0.000000e+00> : vector<16x128xf32>
    %2 = tpu.matmul %0, %1, %cst {dimension_numbers = #tpu.dot_dimension_numbers<[1], [0], [0], [1], [0, 0, 1, 1], [], []>} : vector<16x32xbf16>, vector<32x128xbf16>, vector<16x128xf32> -> vector<16x128xf32>
    %c0_3 = arith.constant 0 : index
    %c0_4 = arith.constant 0 : index
    %3 = vector.load %arg3[%c0_3, %c0_4] : memref<1x128xf32, #tpu.memory_space<vmem>>, vector<1x128xf32>
    %4 = vector.broadcast %3 : vector<1x128xf32> to vector<16x128xf32>
    %5 = arith.addf %2, %4 : vector<16x128xf32>
    %c0_5 = arith.constant 0 : index
    %c0_6 = arith.constant 0 : index
    %6 = vector.load %arg4[%c0_5, %c0_6] : memref<16x128xf32, #tpu.memory_space<vmem>>, vector<16x128xf32>
    tpu.vector_store %arg4[%c0_5, %c0_6], %5 {strides = array<i32>} : memref<16x128xf32, #tpu.memory_space<vmem>>, vector<16x128xf32>,
    return
  }
  func.func @transform_0(%arg0: i32) -> (i32, i32) {
    %c0_i32 = arith.constant 0 : i32
    %c0_i32_0 = arith.constant 0 : i32
    return %arg0, %c0_i32 : i32, i32
  }
  func.func @transform_1(%arg0: i32) -> (i32, i32) {
    %c0_i32 = arith.constant 0 : i32
    %c0_i32_0 = arith.constant 0 : i32
    %c0_i32_1 = arith.constant 0 : i32
    return %c0_i32, %c0_i32_0 : i32, i32
  }
  func.func @transform_2(%arg0: i32) -> (i32, i32) {
    %c0_i32 = arith.constant 0 : i32
    %c0_i32_0 = arith.constant 0 : i32
    %c0_i32_1 = arith.constant 0 : i32
    return %c0_i32, %c0_i32_0 : i32, i32
  }
  func.func @transform_3(%arg0: i32) -> (i32, i32) {
    %c0_i32 = arith.constant 0 : i32
    %c0_i32_0 = arith.constant 0 : i32
    return %arg0, %c0_i32 : i32, i32
  }
}

</mosaic_0001>

<llo_original>
// kernel: liv_featurizer_forward.1
$region0: #{liv_featurizer_forward.1}
  #allocation0 [shape = 'u32[]', space=smem, size = 0x4, offset = 0x4, fixed_abs, tag = 'smem constant byte address 0x4 - core index']
  #allocation1 [shape = 'u32[144,128]{1,0:T(1,128)}', space=vmem, size = 0x12000, scoped, tag = 'internal scratch']
  %s0 = inlined_call_operand.vmem [shape: bf16[16,32], index: 0, kind: input, shape index: {}]
  %s1 = inlined_call_operand.vmem [shape: bf16[32,128], index: 1, kind: input, shape index: {}]
  %s2 = inlined_call_operand.vmem [shape: f32[1,128], index: 2, kind: input, shape index: {}]
  %s3 = inlined_call_operand.vmem [shape: f32[16,128], index: 3, kind: output, shape index: {}]
  %s4 = sld [smem:[#allocation0]]
  $region22: #{liv_featurizer_forward.1} parent=0
    _
  %s6 = ssub.s32 1, %s4
  %s7 = scalar_select 0, %s6, %s4
  // Predicated region
  $region2: #{liv_featurizer_forward.1} parent=0 // pred_check
    _
  $region3: #{liv_featurizer_forward.1} parent=0 // pred_check_branch
    %9 = sbr.rel (0) target = $region5
  $region4: #{liv_featurizer_forward.1} parent=0 // pred_region
    _
  $region5: #{liv_featurizer_forward.1} parent=0 // pred_fallthru
    _
  // Predicated region
  $region6: #{liv_featurizer_forward.1} parent=0 // pred_check
    _
  $region7: #{liv_featurizer_forward.1} parent=0 // pred_check_branch
    %11 = sbr.rel (0) target = $region9
  $region8: #{liv_featurizer_forward.1} parent=0 // pred_region
    _
  $region9: #{liv_featurizer_forward.1} parent=0 // pred_fallthru
    _
  // Predicated region
  $region10: #{liv_featurizer_forward.1} parent=0 // pred_check
    _
  $region11: #{liv_featurizer_forward.1} parent=0 // pred_check_branch
    %13 = sbr.rel (0) target = $region13
  $region12: #{liv_featurizer_forward.1} parent=0 // pred_region
    _
  $region13: #{liv_featurizer_forward.1} parent=0 // pred_fallthru
    _
  %v15 = vld [vmem:[%s0] sm:$0xf]
  %v16 = vld [vmem:[%s0 + $0x4] sm:$0xf]
  %v17 = vld [vmem:[%s1] sm:$0xf]
  %v18 = vld [vmem:[%s1 + $0x4] sm:$0xf]
  %v19 = vld [vmem:[%s1 + $0x8] sm:$0xf]
  %v20 = vld [vmem:[%s1 + $0xc] sm:$0xf]
  %v21 = vld [vmem:[%s2] sm:$0x1]
  %v23 = vlaneseq
  %v24 = vshrl.u32 %v23, 7
  %v25 = vsub.s32 0, %v24
  %v26 = vrot.slane %v21, %v25
  %v30 = vunpack.c.l.b16 %v15
  %v31 = vunpack.c.l.b16 %v16
  %v32 = vpack.c.b16 %v31, %v30
  %v37 = vunpack.c.l.b16 %v17
  %v38 = vunpack.c.l.b16 %v18
  %v39 = vunpack.c.l.b16 %v19
  %v40 = vunpack.c.l.b16 %v20
  %v41 = vpack.c.b16 %v38, %v37
  %v42 = vpack.c.b16 %v40, %v39
  %vm45 = vcmask 261120
  %v47 = vsel %vm45, %v32, 0
  %49 = vmatprep.subr.bf16.mxu0 0
  %50 = vmatpush1.bf16.msra.mxu0 0
  %51 = vmatprep.subr.bf16.mxu0 0
  %52 = vmatpush1.bf16.msra.mxu0 0
  %53 = vmatprep.subr.bf16.mxu0 0
  %54 = vmatpush1.bf16.msra.mxu0 0
  %55 = vmatprep.subr.bf16.mxu0 0
  %56 = vmatpush1.bf16.msra.mxu0 0
  %57 = vmatprep.subr.bf16.mxu0 0
  %58 = vmatpush1.bf16.msra.mxu0 0
  %59 = vmatprep.subr.bf16.mxu0 0
  %60 = vmatpush1.bf16.msra.mxu0 0
  %61 = vmatprep.subr.bf16.mxu0 0
  %62 = vmatpush1.bf16.msra.mxu0 %v42
  %63 = vmatprep.subr.bf16.mxu0 0
  %64 = vmatpush1.bf16.msra.mxu0 %v41
  %65 = vmatprep.subr.bf16.mxu0 0
  %66 = vmatpush2.bf16.msra.mxu0 0
  %67 = vmatprep.subr.bf16.mxu0 0
  %68 = vmatpush2.bf16.msra.mxu0 0
  %69 = vmatprep.subr.bf16.mxu0 0
  %70 = vmatpush2.bf16.msra.mxu0 0
  %71 = vmatprep.subr.bf16.mxu0 0
  %72 = vmatpush2.bf16.msra.mxu0 0
  %73 = vmatprep.subr.bf16.mxu0 0
  %74 = vmatpush2.bf16.msra.mxu0 0
  %75 = vmatprep.subr.bf16.mxu0 0
  %76 = vmatpush2.bf16.msra.mxu0 0
  %77 = vmatprep.subr.bf16.mxu0 0
  %78 = vmatpush2.bf16.msra.mxu0 0
  %79 = vmatprep.subr.bf16.mxu0 0
  %80 = vmatpush2.bf16.msra.mxu0 0
  %81 = vmatprep.mubr.bf16.mxu0 0
  %82 = vmatmul.mubr.bf16.gmra.mxu0 %v47
  %v83 = vpop.f32.mrf.mxu0
  %v84 = vadd.f32 %v26, %v83
  %v85 = vpop.f32.mrf.mxu0
  %v86 = vpop.f32.mrf.mxu0
  %v87 = vadd.f32 %v26, %v86
  %v88 = vpop.f32.mrf.mxu0
  %89 = vdwg.mxu0
  %90 = vst [vmem:[%s3] sm:$0xff] %v84
  %91 = vst [vmem:[%s3 + $0x8] sm:$0xff] %v87
  // Predicated region
  $region14: #{liv_featurizer_forward.1} parent=0 // pred_check
    _
  $region15: #{liv_featurizer_forward.1} parent=0 // pred_check_branch
    %93 = sbr.rel (0) target = $region17
  $region16: #{liv_featurizer_forward.1} parent=0 // pred_region
    _
  $region17: #{liv_featurizer_forward.1} parent=0 // pred_fallthru
    _
  // Predicated region
  $region18: #{liv_featurizer_forward.1} parent=0 // pred_check
    _
  $region19: #{liv_featurizer_forward.1} parent=0 // pred_check_branch
    %95 = sbr.rel (0) target = $region21
  $region20: #{liv_featurizer_forward.1} parent=0 // pred_region
    _
  $region21: #{liv_featurizer_forward.1} parent=0 // pred_fallthru
    _

</llo_original>
